<compile_context>
chip_gen: v7x
topology: tpu7x:2x2x1
jax: 0.10.0
libtpu: 0.0.40
codegen_flags: <defaults>
</compile_context>

<pallas_src>
import jax
import jax.numpy as jnp
from jax.experimental import pallas as pl
from jax.experimental.pallas import tpu as pltpu

LANE = 128
IN_F = 2      # nn.Linear(2, 3)
HID_F = 3
OUT_F = 1     # nn.Linear(3, 1)

TARGET_STEPS = 4       # keep several grid steps for pipelining / both TCs on v7x
MAX_TILE_ROWS = 2048   # 2048 rows * 128 lanes = 256K samples (~3 MiB activations/tile)


def _cdiv(a, b):
    return -(-a // b)


def _round_up(n, m):
    return _cdiv(n, m) * m


def _sigmoid(z):
    # sigmoid(z) = 0.5 * tanh(z/2) + 0.5 : a single EUP op (vs exp + reciprocal).
    return 0.5 * jnp.tanh(0.5 * z) + 0.5


def _mlp_kernel(x_ref, w1_ref, b1_ref, w2_ref, b2_ref, o_ref):
    # x_ref: (IN_F, TBR, LANE) VMEM, sample index = (row, lane).  o_ref: (TBR, LANE).
    # w1_ref (2,3), b1_ref (3,), w2_ref (3,1), b2_ref (1,): SMEM scalars.
    x0 = x_ref[0]                           # (TBR, LANE), lane-dense vregs
    x1 = x_ref[1]
    z2 = jnp.zeros_like(x0) + b2_ref[0]
    for j in range(HID_F):                  # unrolled at trace time: 3 hidden units
        z1 = x0 * w1_ref[0, j] + x1 * w1_ref[1, j] + b1_ref[j]
        z2 = z2 + _sigmoid(z1) * w2_ref[j, 0]
    o_ref[...] = _sigmoid(z2)


@jax.jit
def mlp_forward(x, w1, b1, w2, b2):
    """x: (B, 2) f32; w1: (2,3); b1: (3,); w2: (3,1); b2: (1,). Returns (B, 1)."""
    B = x.shape[0]
    rows = max(1, _cdiv(B, LANE))                                  # 128-sample rows
    tbr = min(MAX_TILE_ROWS, max(8, _round_up(_cdiv(rows, TARGET_STEPS), 8)))
    steps = _cdiv(rows, tbr)
    rows_p = steps * tbr                                           # padded rows (< 1 tile waste)
    BP = rows_p * LANE

    # (B,2) -> (2, rows_p, 128): one fused transpose+pad pass in XLA, then a free
    # row-major reshape.  Sample s lives at (row=s//128, lane=s%128).
    xT = jnp.transpose(x)                                          # (2, B)
    xT = jnp.pad(xT, ((0, 0), (0, BP - B)))
    x3 = xT.reshape(IN_F, rows_p, LANE)

    smem = pl.BlockSpec(memory_space=pltpu.MemorySpace.SMEM)

    out3 = pl.pallas_call(
        _mlp_kernel,
        out_shape=jax.ShapeDtypeStruct((rows_p, LANE), jnp.float32),
        grid=(steps,),
        in_specs=[
            pl.BlockSpec((IN_F, tbr, LANE), lambda i: (0, i, 0)),  # batch-tiled activations
            smem, smem, smem, smem,                                # tiny params in SMEM
        ],
        out_specs=pl.BlockSpec((tbr, LANE), lambda i: (i, 0)),
        compiler_params=pltpu.CompilerParams(
            dimension_semantics=("parallel",),
            vmem_limit_bytes=32 * 1024 * 1024,
        ),
    )(x3, w1, b1, w2, b2)

    # Free reshape + slice back to (B, 1); padded samples are discarded.
    return out3.reshape(BP)[:B].reshape(B, OUT_F)


def _init_params(key):
    # Deterministic init mimicking PyTorch nn.Linear (uniform +/- 1/sqrt(fan_in)).
    k1, k2, k3, k4 = jax.random.split(key, 4)
    bound1 = 1.0 / jnp.sqrt(float(IN_F))
    bound2 = 1.0 / jnp.sqrt(float(HID_F))
    w1 = jax.random.uniform(k1, (IN_F, HID_F), jnp.float32, -bound1, bound1)
    b1 = jax.random.uniform(k2, (HID_F,), jnp.float32, -bound1, bound1)
    w2 = jax.random.uniform(k3, (HID_F, OUT_F), jnp.float32, -bound2, bound2)
    b2 = jax.random.uniform(k4, (OUT_F,), jnp.float32, -bound2, bound2)
    return w1, b1, w2, b2


def _reference(x, w1, b1, w2, b2):
    a1 = jax.nn.sigmoid(x @ w1 + b1)
    return jax.nn.sigmoid(a1 @ w2 + b2)


if __name__ == "__main__":
    key = jax.random.PRNGKey(0)
    kx, kp = jax.random.split(key)
    batch = 8
    x = jax.random.normal(kx, (batch, IN_F), jnp.float32)
    w1, b1, w2, b2 = _init_params(kp)

    out = jax.block_until_ready(mlp_forward(x, w1, b1, w2, b2))

    ref = _reference(x, w1, b1, w2, b2)
    assert out.shape == (batch, OUT_F), out.shape
    assert jnp.allclose(out, ref, atol=1e-5, rtol=1e-5), (out, ref)

    print("KERNEL_OK")
</pallas_src>

<mosaic_0001>
module attributes {stable_mosaic.version = 11 : i64} {
  func.func @_mlp_kernel(%arg0: i32, %arg1: memref<2x8x128xf32, #tpu.memory_space<vmem>>, %arg2: memref<2x3xf32, #tpu.memory_space<smem>>, %arg3: memref<3xf32, #tpu.memory_space<smem>>, %arg4: memref<3x1xf32, #tpu.memory_space<smem>>, %arg5: memref<1xf32, #tpu.memory_space<smem>>, %arg6: memref<8x128xf32, #tpu.memory_space<vmem>>) attributes {dimension_semantics = [#tpu.dimension_semantics<parallel>], iteration_bounds = array<i64: 1>, scalar_prefetch = 0 : i64, scratch_operands = 0 : i64, tpu.core_type = #tpu.core_type<tc>, window_params = [{transform_indices = @transform_0, window_bounds = array<i64: 2, 8, 128>}, {transform_indices = @transform_1, window_bounds = array<i64: 2, 3>}, {transform_indices = @transform_2, window_bounds = array<i64: 3>}, {transform_indices = @transform_3, window_bounds = array<i64: 3, 1>}, {transform_indices = @transform_4, window_bounds = array<i64: 1>}, {transform_indices = @transform_5, window_bounds = array<i64: 8, 128>}]} {
    %c0 = arith.constant 0 : index
    %c0_0 = arith.constant 0 : index
    %c0_1 = arith.constant 0 : index
    %0 = vector.load %arg1[%c0, %c0_0, %c0_1] : memref<2x8x128xf32, #tpu.memory_space<vmem>>, vector<1x8x128xf32>
    %1 = vector.shape_cast %0 : vector<1x8x128xf32> to vector<8x128xf32>
    %c1 = arith.constant 1 : index
    %c0_2 = arith.constant 0 : index
    %c0_3 = arith.constant 0 : index
    %2 = vector.load %arg1[%c1, %c0_2, %c0_3] : memref<2x8x128xf32, #tpu.memory_space<vmem>>, vector<1x8x128xf32>
    %3 = vector.shape_cast %2 : vector<1x8x128xf32> to vector<8x128xf32>
    %cst = arith.constant 0.000000e+00 : f32
    %4 = vector.broadcast %cst : f32 to vector<8x128xf32>
    %c0_4 = arith.constant 0 : index
    %5 = memref.load %arg5[%c0_4] : memref<1xf32, #tpu.memory_space<smem>>
    %6 = vector.broadcast %5 : f32 to vector<8x128xf32>
    %7 = arith.addf %4, %6 : vector<8x128xf32>
    %c0_5 = arith.constant 0 : index
    %c0_6 = arith.constant 0 : index
    %8 = memref.load %arg2[%c0_5, %c0_6] : memref<2x3xf32, #tpu.memory_space<smem>>
    %9 = vector.broadcast %8 : f32 to vector<8x128xf32>
    %10 = arith.mulf %1, %9 : vector<8x128xf32>
    %c1_7 = arith.constant 1 : index
    %c0_8 = arith.constant 0 : index
    %11 = memref.load %arg2[%c1_7, %c0_8] : memref<2x3xf32, #tpu.memory_space<smem>>
    %12 = vector.broadcast %11 : f32 to vector<8x128xf32>
    %13 = arith.mulf %3, %12 : vector<8x128xf32>
    %14 = arith.addf %10, %13 : vector<8x128xf32>
    %c0_9 = arith.constant 0 : index
    %15 = memref.load %arg3[%c0_9] : memref<3xf32, #tpu.memory_space<smem>>
    %16 = vector.broadcast %15 : f32 to vector<8x128xf32>
    %17 = arith.addf %14, %16 : vector<8x128xf32>
    %cst_10 = arith.constant 5.000000e-01 : f32
    %18 = vector.broadcast %cst_10 : f32 to vector<8x128xf32>
    %19 = arith.mulf %18, %17 : vector<8x128xf32>
    %20 = math.tanh %19 : vector<8x128xf32>
    %cst_11 = arith.constant 5.000000e-01 : f32
    %21 = vector.broadcast %cst_11 : f32 to vector<8x128xf32>
    %22 = arith.mulf %21, %20 : vector<8x128xf32>
    %cst_12 = arith.constant 5.000000e-01 : f32
    %23 = vector.broadcast %cst_12 : f32 to vector<8x128xf32>
    %24 = arith.addf %22, %23 : vector<8x128xf32>
    %c0_13 = arith.constant 0 : index
    %c0_14 = arith.constant 0 : index
    %25 = memref.load %arg4[%c0_13, %c0_14] : memref<3x1xf32, #tpu.memory_space<smem>>
    %26 = vector.broadcast %25 : f32 to vector<8x128xf32>
    %27 = arith.mulf %24, %26 : vector<8x128xf32>
    %28 = arith.addf %7, %27 : vector<8x128xf32>
    %c0_15 = arith.constant 0 : index
    %c1_16 = arith.constant 1 : index
    %29 = memref.load %arg2[%c0_15, %c1_16] : memref<2x3xf32, #tpu.memory_space<smem>>
    %30 = vector.broadcast %29 : f32 to vector<8x128xf32>
    %31 = arith.mulf %1, %30 : vector<8x128xf32>
    %c1_17 = arith.constant 1 : index
    %c1_18 = arith.constant 1 : index
    %32 = memref.load %arg2[%c1_17, %c1_18] : memref<2x3xf32, #tpu.memory_space<smem>>
    %33 = vector.broadcast %32 : f32 to vector<8x128xf32>
    %34 = arith.mulf %3, %33 : vector<8x128xf32>
    %35 = arith.addf %31, %34 : vector<8x128xf32>
    %c1_19 = arith.constant 1 : index
    %36 = memref.load %arg3[%c1_19] : memref<3xf32, #tpu.memory_space<smem>>
    %37 = vector.broadcast %36 : f32 to vector<8x128xf32>
    %38 = arith.addf %35, %37 : vector<8x128xf32>
    %cst_20 = arith.constant 5.000000e-01 : f32
    %39 = vector.broadcast %cst_20 : f32 to vector<8x128xf32>
    %40 = arith.mulf %39, %38 : vector<8x128xf32>
    %41 = math.tanh %40 : vector<8x128xf32>
    %cst_21 = arith.constant 5.000000e-01 : f32
    %42 = vector.broadcast %cst_21 : f32 to vector<8x128xf32>
    %43 = arith.mulf %42, %41 : vector<8x128xf32>
    %cst_22 = arith.constant 5.000000e-01 : f32
    %44 = vector.broadcast %cst_22 : f32 to vector<8x128xf32>
    %45 = arith.addf %43, %44 : vector<8x128xf32>
    %c1_23 = arith.constant 1 : index
    %c0_24 = arith.constant 0 : index
    %46 = memref.load %arg4[%c1_23, %c0_24] : memref<3x1xf32, #tpu.memory_space<smem>>
    %47 = vector.broadcast %46 : f32 to vector<8x128xf32>
    %48 = arith.mulf %45, %47 : vector<8x128xf32>
    %49 = arith.addf %28, %48 : vector<8x128xf32>
    %c0_25 = arith.constant 0 : index
    %c2 = arith.constant 2 : index
    %50 = memref.load %arg2[%c0_25, %c2] : memref<2x3xf32, #tpu.memory_space<smem>>
    %51 = vector.broadcast %50 : f32 to vector<8x128xf32>
    %52 = arith.mulf %1, %51 : vector<8x128xf32>
    %c1_26 = arith.constant 1 : index
    %c2_27 = arith.constant 2 : index
    %53 = memref.load %arg2[%c1_26, %c2_27] : memref<2x3xf32, #tpu.memory_space<smem>>
    %54 = vector.broadcast %53 : f32 to vector<8x128xf32>
    %55 = arith.mulf %3, %54 : vector<8x128xf32>
    %56 = arith.addf %52, %55 : vector<8x128xf32>
    %c2_28 = arith.constant 2 : index
    %57 = memref.load %arg3[%c2_28] : memref<3xf32, #tpu.memory_space<smem>>
    %58 = vector.broadcast %57 : f32 to vector<8x128xf32>
    %59 = arith.addf %56, %58 : vector<8x128xf32>
    %cst_29 = arith.constant 5.000000e-01 : f32
    %60 = vector.broadcast %cst_29 : f32 to vector<8x128xf32>
    %61 = arith.mulf %60, %59 : vector<8x128xf32>
    %62 = math.tanh %61 : vector<8x128xf32>
    %cst_30 = arith.constant 5.000000e-01 : f32
    %63 = vector.broadcast %cst_30 : f32 to vector<8x128xf32>
    %64 = arith.mulf %63, %62 : vector<8x128xf32>
    %cst_31 = arith.constant 5.000000e-01 : f32
    %65 = vector.broadcast %cst_31 : f32 to vector<8x128xf32>
    %66 = arith.addf %64, %65 : vector<8x128xf32>
    %c2_32 = arith.constant 2 : index
    %c0_33 = arith.constant 0 : index
    %67 = memref.load %arg4[%c2_32, %c0_33] : memref<3x1xf32, #tpu.memory_space<smem>>
    %68 = vector.broadcast %67 : f32 to vector<8x128xf32>
    %69 = arith.mulf %66, %68 : vector<8x128xf32>
    %70 = arith.addf %49, %69 : vector<8x128xf32>
    %cst_34 = arith.constant 5.000000e-01 : f32
    %71 = vector.broadcast %cst_34 : f32 to vector<8x128xf32>
    %72 = arith.mulf %71, %70 : vector<8x128xf32>
    %73 = math.tanh %72 : vector<8x128xf32>
    %cst_35 = arith.constant 5.000000e-01 : f32
    %74 = vector.broadcast %cst_35 : f32 to vector<8x128xf32>
    %75 = arith.mulf %74, %73 : vector<8x128xf32>
    %cst_36 = arith.constant 5.000000e-01 : f32
    %76 = vector.broadcast %cst_36 : f32 to vector<8x128xf32>
    %77 = arith.addf %75, %76 : vector<8x128xf32>
    %c0_37 = arith.constant 0 : index
    %c0_38 = arith.constant 0 : index
    %78 = vector.load %arg6[%c0_37, %c0_38] : memref<8x128xf32, #tpu.memory_space<vmem>>, vector<8x128xf32>
    tpu.vector_store %arg6[%c0_37, %c0_38], %77 {strides = array<i32>} : memref<8x128xf32, #tpu.memory_space<vmem>>, vector<8x128xf32>,
    return
  }
  func.func @transform_0(%arg0: i32) -> (i32, i32, i32) {
    %c0_i32 = arith.constant 0 : i32
    %c0_i32_0 = arith.constant 0 : i32
    %c0_i32_1 = arith.constant 0 : i32
    return %c0_i32, %arg0, %c0_i32_0 : i32, i32, i32
  }
  func.func @transform_1(%arg0: i32) -> (i32, i32) {
    %c0_i32 = arith.constant 0 : i32
    %c0_i32_0 = arith.constant 0 : i32
    %c0_i32_1 = arith.constant 0 : i32
    return %c0_i32, %c0_i32_0 : i32, i32
  }
  func.func @transform_2(%arg0: i32) -> i32 {
    %c0_i32 = arith.constant 0 : i32
    %c0_i32_0 = arith.constant 0 : i32
    return %c0_i32 : i32
  }
  func.func @transform_3(%arg0: i32) -> (i32, i32) {
    %c0_i32 = arith.constant 0 : i32
    %c0_i32_0 = arith.constant 0 : i32
    %c0_i32_1 = arith.constant 0 : i32
    return %c0_i32, %c0_i32_0 : i32, i32
  }
  func.func @transform_4(%arg0: i32) -> i32 {
    %c0_i32 = arith.constant 0 : i32
    %c0_i32_0 = arith.constant 0 : i32
    return %c0_i32 : i32
  }
  func.func @transform_5(%arg0: i32) -> (i32, i32) {
    %c0_i32 = arith.constant 0 : i32
    %c0_i32_0 = arith.constant 0 : i32
    return %arg0, %c0_i32 : i32, i32
  }
}

</mosaic_0001>

<llo_original>
// kernel: mlp_forward.1
$region0: #{mlp_forward.1}
  #allocation0 [shape = 'u32[]', space=smem, size = 0x4, offset = 0x4, fixed_abs, tag = 'smem constant byte address 0x4 - core index']
  #allocation1 [shape = 'u32[144,128]{1,0:T(1,128)}', space=vmem, size = 0x12000, scoped, tag = 'internal scratch']
  #allocation2 [shape = 'f32[1]{0:T(128)S(6)}', space=smem, size = 0x200, scoped, tag = 'scoped memory for mlp_forward.1']
  %s0 = inlined_call_operand.vmem [shape: f32[2,8,128], index: 0, kind: input, shape index: {}]
  %s1 = inlined_call_operand.vmem [shape: f32[2,3], index: 1, kind: input, shape index: {}]
  %s2 = inlined_call_operand.vmem [shape: f32[3], index: 2, kind: input, shape index: {}]
  %s3 = inlined_call_operand.vmem [shape: f32[3,1], index: 3, kind: input, shape index: {}]
  %s4 = inlined_call_operand.<no memory space> [shape: f32[1], index: 4, kind: input, shape index: {}]
  %s5 = inlined_call_operand.vmem [shape: f32[8,128], index: 5, kind: output, shape index: {}]
  %s6 = sld [smem:[#allocation0]]
  $region42: #{mlp_forward.1} parent=0
    _
  %s8 = ssub.s32 1, %s6
  %s9 = scalar_select 0, %s8, %s6
  %10 = sst [smem:[#allocation2]] %s4
  $region1: #{mlp_forward.1} parent=0
    #allocation3 [shape = 'u8[1024]{0}', space=smem, size = 0x400, scoped, tag = 'input window, operand 1, single buffered']
    #allocation4 [shape = 's32[1]{0}', space=sflag, size = 0x4, scoped, tag = 'scoped memory for mlp_forward.1']
    #allocation5 [shape = 'u8[512]{0}', space=smem, size = 0x200, scoped, tag = 'input window, operand 2, single buffered']
    #allocation6 [shape = 's32[1]{0}', space=sflag, size = 0x4, scoped, tag = 'scoped memory for mlp_forward.1']
    #allocation7 [shape = 'u8[2048]{0}', space=smem, size = 0x800, scoped, tag = 'input window, operand 3, single buffered']
    %11 = vsyncpa [#allocation4], 0
    %12 = vsyncpa [#allocation6], 0
    // Predicated region
    $region2: #{mlp_forward.1} parent=1 // pred_check
      _
    $region3: #{mlp_forward.1} parent=1 // pred_check_branch
      %14 = sbr.rel (0) target = $region5
    $region4: #{mlp_forward.1} parent=1 // pred_region
      _
    $region5: #{mlp_forward.1} parent=1 // pred_fallthru
      _
    // Predicated region
    $region6: #{mlp_forward.1} parent=1 // pred_check
      _
    $region7: #{mlp_forward.1} parent=1 // pred_check_branch
      %16 = sbr.rel (0) target = $region9
    $region8: #{mlp_forward.1} parent=1 // pred_region
      %s18 = ssub.s32 32, 32
      %19 = vsyncadd [#allocation4], %s18
      %s21 = sshll.u32 %s1, 4
      %s22 = int_to_ptr.vmem [resolvable:$true] %s21
      %24 = dma.vmem_to_smem %s22, 32, [#allocation3], [#allocation4]
    $region9: #{mlp_forward.1} parent=1 // pred_fallthru
      _
    // Predicated region
    $region10: #{mlp_forward.1} parent=1 // pred_check
      _
    $region11: #{mlp_forward.1} parent=1 // pred_check_branch
      %26 = sbr.rel (0) target = $region13
    $region12: #{mlp_forward.1} parent=1 // pred_region
      %s28 = ssub.s32 16, 16
      %29 = vsyncadd [#allocation6], %s28
      %s31 = sshll.u32 %s2, 4
      %s32 = int_to_ptr.vmem [resolvable:$true] %s31
      %34 = dma.vmem_to_smem %s32, 16, [#allocation5], [#allocation6]
    $region13: #{mlp_forward.1} parent=1 // pred_fallthru
      _
    // Predicated region
    $region14: #{mlp_forward.1} parent=1 // pred_check
      _
    $region15: #{mlp_forward.1} parent=1 // pred_check_branch
      %36 = sbr.rel (0) target = $region17
    $region16: #{mlp_forward.1} parent=1 // pred_region
      %s38 = ssub.s32 64, 64
      %39 = vsyncadd [#allocation6], %s38
      %s41 = sshll.u32 %s3, 4
      %s42 = int_to_ptr.vmem [resolvable:$true] %s41
      %44 = dma.vmem_to_smem %s42, 64, [#allocation7], [#allocation6]
    $region17: #{mlp_forward.1} parent=1 // pred_fallthru
      _
    // Predicated region
    $region18: #{mlp_forward.1} parent=1 // pred_check
      _
    $region19: #{mlp_forward.1} parent=1 // pred_check_branch
      %46 = sbr.rel (0) target = $region21
    $region20: #{mlp_forward.1} parent=1 // pred_region
      _
    $region21: #{mlp_forward.1} parent=1 // pred_fallthru
      _
    // Predicated region
    $region22: #{mlp_forward.1} parent=1 // pred_check
      _
    $region23: #{mlp_forward.1} parent=1 // pred_check_branch
      %48 = sbr.rel (0) target = $region25
    $region24: #{mlp_forward.1} parent=1 // pred_region
      %49 = dma.done [#allocation4], 32
    $region25: #{mlp_forward.1} parent=1 // pred_fallthru
      _
    // Predicated region
    $region26: #{mlp_forward.1} parent=1 // pred_check
      _
    $region27: #{mlp_forward.1} parent=1 // pred_check_branch
      %51 = sbr.rel (0) target = $region29
    $region28: #{mlp_forward.1} parent=1 // pred_region
      %52 = dma.done [#allocation6], 16
    $region29: #{mlp_forward.1} parent=1 // pred_fallthru
      _
    // Predicated region
    $region30: #{mlp_forward.1} parent=1 // pred_check
      _
    $region31: #{mlp_forward.1} parent=1 // pred_check_branch
      %54 = sbr.rel (0) target = $region33
    $region32: #{mlp_forward.1} parent=1 // pred_region
      %55 = dma.done [#allocation6], 64
    $region33: #{mlp_forward.1} parent=1 // pred_fallthru
      _
    %56 = sfence
    %v57 = vld [vmem:[%s0] sm:$0xff]
    %s58 = scalar_lea.vmem %s0, 8
    %v59 = vld [vmem:[%s58] sm:$0xff]
    %s60 = sld [smem:[#allocation2]]
    %v61 = vstv %s60
    %v62 = vadd.f32 %v61, 0.0
    %s63 = sld [smem:[#allocation3]]
    %v64 = vstv %s63
    %v65 = vmul.f32 %v57, %v64
    %s66 = sld [smem:[#allocation3 + $0x80]]
    %v67 = vstv %s66
    %v68 = vmul.f32 %v59, %v67
    %v69 = vadd.f32 %v65, %v68
    %s70 = sld [smem:[#allocation5]]
    %v71 = vstv %s70
    %v72 = vadd.f32 %v69, %v71
    %v73 = vmul.f32 %v72, 0.5
    %v74 = vtanh.pop %v73
    %v75 = vmul.f32 %v74, 0.5
    %v76 = vadd.f32 %v75, 0.5
    %s77 = sld [smem:[#allocation7]]
    %v78 = vstv %s77
    %v79 = vmul.f32 %v76, %v78
    %v80 = vadd.f32 %v62, %v79
    %s81 = sld [smem:[#allocation3 + $0x1]]
    %v82 = vstv %s81
    %v83 = vmul.f32 %v57, %v82
    %s84 = sld [smem:[#allocation3 + $0x81]]
    %v85 = vstv %s84
    %v86 = vmul.f32 %v59, %v85
    %v87 = vadd.f32 %v83, %v86
    %s88 = sld [smem:[#allocation5 + $0x1]]
    %v89 = vstv %s88
    %v90 = vadd.f32 %v87, %v89
    %v91 = vmul.f32 %v90, 0.5
    %v92 = vtanh.pop %v91
    %v93 = vmul.f32 %v92, 0.5
    %v94 = vadd.f32 %v93, 0.5
    %s95 = sld [smem:[#allocation7 + $0x80]]
    %v96 = vstv %s95
    %v97 = vmul.f32 %v94, %v96
    %v98 = vadd.f32 %v80, %v97
    %s99 = sld [smem:[#allocation3 + $0x2]]
    %v100 = vstv %s99
    %v101 = vmul.f32 %v57, %v100
    %s102 = sld [smem:[#allocation3 + $0x82]]
    %v103 = vstv %s102
    %v104 = vmul.f32 %v59, %v103
    %v105 = vadd.f32 %v101, %v104
    %s106 = sld [smem:[#allocation5 + $0x2]]
    %v107 = vstv %s106
    %v108 = vadd.f32 %v105, %v107
    %v109 = vmul.f32 %v108, 0.5
    %v110 = vtanh.pop %v109
    %v111 = vmul.f32 %v110, 0.5
    %v112 = vadd.f32 %v111, 0.5
    %s113 = sld [smem:[#allocation7 + $0x100]]
    %v114 = vstv %s113
    %v115 = vmul.f32 %v112, %v114
    %v116 = vadd.f32 %v98, %v115
    %v117 = vmul.f32 %v116, 0.5
    %v118 = vtanh.pop %v117
    %v119 = vmul.f32 %v118, 0.5
    %v120 = vadd.f32 %v119, 0.5
    %121 = vst [vmem:[%s5] sm:$0xff] %v120
    // Predicated region
    $region34: #{mlp_forward.1} parent=1 // pred_check
      _
    $region35: #{mlp_forward.1} parent=1 // pred_check_branch
      %123 = sbr.rel (0) target = $region37
    $region36: #{mlp_forward.1} parent=1 // pred_region
      _
    $region37: #{mlp_forward.1} parent=1 // pred_fallthru
      _
    // Predicated region
    $region38: #{mlp_forward.1} parent=1 // pred_check
      _
    $region39: #{mlp_forward.1} parent=1 // pred_check_branch
      %125 = sbr.rel (0) target = $region41
    $region40: #{mlp_forward.1} parent=1 // pred_region
      _
    $region41: #{mlp_forward.1} parent=1 // pred_fallthru
      _
    %126 = vsyncpa [#allocation4], 1
    %127 = vsyncpa [#allocation6], 1

</llo_original>
